<compile_context>
chip_gen: v7x
topology: tpu7x:2x2x1
jax: 0.10.0
libtpu: 0.0.40
codegen_flags: <defaults>
</compile_context>

<pallas_src>
import functools

import jax
import jax.numpy as jnp
from jax.experimental import pallas as pl
from jax.experimental.pallas import tpu as pltpu


def _round_up(n, m):
    return ((n + m - 1) // m) * m


def _network_kernel(x_ref, wf_ref, bf_ref, w1_ref, b1_ref, w2_ref, b2_ref,
                    wl_ref, bl_ref, bound_ref, out_ref,
                    *, depth, activation, penalty, matmul_dtype):
    f32 = jnp.float32
    cdt = matmul_dtype
    is_sin = activation in ("Sin", "sin")

    # Hoist all weight / bias loads out of the depth loop (shared Block).
    wf = wf_ref[...]
    bf = bf_ref[...]
    w1 = w1_ref[...]
    b1 = b1_ref[...]
    w2 = w2_ref[...]
    b2 = b2_ref[...]
    wl = wl_ref[...]
    bl = bl_ref[...]

    # first: Linear(inputs -> width).  Accumulate + residual in f32.
    h = jnp.dot(x_ref[...], wf, preferred_element_type=f32) + bf

    def block(h):
        if is_sin:
            # a = sin(L2(sin(L1(x)))) + x
            t = jnp.sin(jnp.dot(h.astype(cdt), w1, preferred_element_type=f32) + b1)
            t = jnp.sin(jnp.dot(t.astype(cdt), w2, preferred_element_type=f32) + b2)
        else:
            # a = tanh(L1(tanh(L2(x)))) + x   (act = Tanh)
            t = jnp.tanh(jnp.dot(h.astype(cdt), w2, preferred_element_type=f32) + b2)
            t = jnp.tanh(jnp.dot(t.astype(cdt), w1, preferred_element_type=f32) + b1)
        return t + h

    if depth <= 8:
        # Small depth: static unroll (LLO schedules across iterations).
        for _ in range(depth):
            h = block(h)
    else:
        # Large depth: visible loop bounds vreg live ranges.
        h = jax.lax.fori_loop(0, depth, lambda _, hh: block(hh), h)

    # last: Linear(width -> output)
    y = jnp.dot(h.astype(cdt), wl, preferred_element_type=f32) + bl

    if penalty == "Sigmoid":
        y = jax.nn.sigmoid(y) * bound_ref[0]
    elif penalty == "Tanh":
        y = jnp.tanh(y) * bound_ref[0]
    # penalty is None -> raw output

    out_ref[...] = y.astype(out_ref.dtype)


def network_forward(x, weights, *, depth, activation="Tanh", penalty=None,
                    matmul_dtype=jnp.bfloat16, block_batch=512):
    """x: [batch, inputs] float32. weights: dict of pre-transposed ([in,out]) params."""
    batch, inputs = x.shape
    width = weights["w1"].shape[0]
    output = weights["wl"].shape[1]

    # Lane-dense padding of the feature axes (zero padding is exact here:
    # padded columns stay 0 through tanh/sin/residual and are sliced off).
    w_p = _round_up(width, 128)
    out_p = _round_up(output, 128)

    # Batch tile: largest tile up to block_batch, multiple of 8.
    tm = min(_round_up(block_batch, 8), _round_up(batch, 8))
    b_p = _round_up(batch, tm)
    grid = (b_p // tm,)

    def pad2(a, r, c, dt):
        return jnp.pad(a, ((0, r - a.shape[0]), (0, c - a.shape[1]))).astype(dt)

    x_p = pad2(x, b_p, inputs, matmul_dtype)
    wf_p = pad2(weights["wf"], inputs, w_p, matmul_dtype)
    bf_p = pad2(weights["bf"], 1, w_p, jnp.float32)
    w1_p = pad2(weights["w1"], w_p, w_p, matmul_dtype)
    b1_p = pad2(weights["b1"], 1, w_p, jnp.float32)
    w2_p = pad2(weights["w2"], w_p, w_p, matmul_dtype)
    b2_p = pad2(weights["b2"], 1, w_p, jnp.float32)
    wl_p = pad2(weights["wl"], w_p, out_p, matmul_dtype)
    bl_p = pad2(weights["bl"], 1, out_p, jnp.float32)
    bound = weights["bound"].astype(jnp.float32).reshape((1,))

    kernel = functools.partial(_network_kernel, depth=depth,
                               activation=activation, penalty=penalty,
                               matmul_dtype=matmul_dtype)

    const = lambda i: (0, 0)  # weights/biases: same block every step -> resident

    # Scoped VMEM budget: double-buffered x/out tiles + resident weights + h.
    mm_bytes = jnp.dtype(matmul_dtype).itemsize
    est = (2 * tm * inputs * mm_bytes
           + 2 * tm * out_p * 4
           + 2 * (inputs * w_p + 2 * w_p * w_p + w_p * out_p) * mm_bytes
           + 4 * 4 * (3 * w_p + out_p)
           + 4 * tm * w_p * 4)
    vmem_limit = int(min(max(2 * est, 32 * 1024 * 1024), 48 * 1024 * 1024))

    out_padded = pl.pallas_call(
        kernel,
        out_shape=jax.ShapeDtypeStruct((b_p, out_p), jnp.float32),
        grid=grid,
        in_specs=[
            pl.BlockSpec((tm, inputs), lambda i: (i, 0)),        # x (batch-tiled)
            pl.BlockSpec((inputs, w_p), const),                  # wf
            pl.BlockSpec((1, w_p), const),                       # bf
            pl.BlockSpec((w_p, w_p), const),                     # w1 (Block.L1)
            pl.BlockSpec((1, w_p), const),                       # b1
            pl.BlockSpec((w_p, w_p), const),                     # w2 (Block.L2)
            pl.BlockSpec((1, w_p), const),                       # b2
            pl.BlockSpec((w_p, out_p), const),                   # wl
            pl.BlockSpec((1, out_p), const),                     # bl
            pl.BlockSpec(memory_space=pltpu.MemorySpace.SMEM),   # bound (scalar)
        ],
        out_specs=pl.BlockSpec((tm, out_p), lambda i: (i, 0)),
        compiler_params=pltpu.CompilerParams(
            dimension_semantics=("parallel",),
            vmem_limit_bytes=vmem_limit),
    )(x_p, wf_p, bf_p, w1_p, b1_p, w2_p, b2_p, wl_p, bl_p, bound)

    return out_padded[:batch, :output]


def init_weights(key, inputs, width, output):
    """Deterministic PyTorch-Linear-style uniform init, weights stored [in, out]."""
    ks = jax.random.split(key, 8)

    def linear(kw, kb, fan_in, fan_out):
        bound = 1.0 / jnp.sqrt(fan_in)
        w = jax.random.uniform(kw, (fan_in, fan_out), jnp.float32, -bound, bound)
        b = jax.random.uniform(kb, (1, fan_out), jnp.float32, -bound, bound)
        return w, b

    wf, bf = linear(ks[0], ks[1], inputs, width)   # first
    w1, b1 = linear(ks[2], ks[3], width, width)    # Block.L1 (shared)
    w2, b2 = linear(ks[4], ks[5], width, width)    # Block.L2 (shared)
    wl, bl = linear(ks[6], ks[7], width, output)   # last
    bound = jnp.array([1.0], dtype=jnp.float32)    # nn.Parameter(torch.tensor(1.0))
    return dict(wf=wf, bf=bf, w1=w1, b1=b1, w2=w2, b2=b2, wl=wl, bl=bl,
                bound=bound)


def reference_forward(x, w, *, depth, activation="Tanh", penalty=None,
                      matmul_dtype=jnp.float32):
    """Pure-JAX reference mirroring the kernel's numerics (matmul-operand cast)."""
    f32 = jnp.float32

    def mm(a, b):
        return jnp.dot(a.astype(matmul_dtype), b.astype(matmul_dtype),
                       preferred_element_type=f32)

    h = mm(x, w["wf"]) + w["bf"]
    for _ in range(depth):
        if activation in ("Sin", "sin"):
            t = jnp.sin(mm(h, w["w1"]) + w["b1"])
            t = jnp.sin(mm(t, w["w2"]) + w["b2"])
        else:
            t = jnp.tanh(mm(h, w["w2"]) + w["b2"])
            t = jnp.tanh(mm(t, w["w1"]) + w["b1"])
        h = t + h
    y = mm(h, w["wl"]) + w["bl"]
    if penalty == "Sigmoid":
        y = jax.nn.sigmoid(y) * w["bound"][0]
    elif penalty == "Tanh":
        y = jnp.tanh(y) * w["bound"][0]
    return y


if __name__ == "__main__":
    # Small config consistent with the module's params dict.
    params = dict(inputs=4, width=32, output=2, depth=3,
                  activation="Tanh", penalty="Tanh")
    batch = 50   # not a multiple of the batch tile -> exercises padding + grid

    key = jax.random.PRNGKey(0)
    kx, kw = jax.random.split(key)
    x = jax.random.normal(kx, (batch, params["inputs"]), dtype=jnp.float32)
    weights = init_weights(kw, params["inputs"], params["width"], params["output"])

    out = network_forward(x, weights, depth=params["depth"],
                          activation=params["activation"],
                          penalty=params["penalty"],
                          matmul_dtype=jnp.bfloat16,
                          block_batch=32)          # small tile -> 2 grid steps
    out = jax.block_until_ready(out)
    assert out.shape == (batch, params["output"])

    # Reference mirroring the kernel numerics (bf16 matmul operands, f32
    # accumulation / residual / transcendentals).
    ref = reference_forward(x, weights, depth=params["depth"],
                            activation=params["activation"],
                            penalty=params["penalty"],
                            matmul_dtype=jnp.bfloat16)
    assert jnp.allclose(out, ref, atol=5e-3, rtol=5e-3), \
        float(jnp.max(jnp.abs(out - ref)))

    print("KERNEL_OK")
</pallas_src>

<mosaic_0001>
module attributes {stable_mosaic.version = 11 : i64} {
  func.func @_network_kernel(%arg0: i32, %arg1: memref<32x4xbf16, #tpu.memory_space<vmem>>, %arg2: memref<4x128xbf16, #tpu.memory_space<vmem>>, %arg3: memref<1x128xf32, #tpu.memory_space<vmem>>, %arg4: memref<128x128xbf16, #tpu.memory_space<vmem>>, %arg5: memref<1x128xf32, #tpu.memory_space<vmem>>, %arg6: memref<128x128xbf16, #tpu.memory_space<vmem>>, %arg7: memref<1x128xf32, #tpu.memory_space<vmem>>, %arg8: memref<128x128xbf16, #tpu.memory_space<vmem>>, %arg9: memref<1x128xf32, #tpu.memory_space<vmem>>, %arg10: memref<1xf32, #tpu.memory_space<smem>>, %arg11: memref<32x128xf32, #tpu.memory_space<vmem>>) attributes {dimension_semantics = [#tpu.dimension_semantics<parallel>], iteration_bounds = array<i64: 2>, scalar_prefetch = 0 : i64, scratch_operands = 0 : i64, tpu.core_type = #tpu.core_type<tc>, window_params = [{transform_indices = @transform_0, window_bounds = array<i64: 32, 4>}, {pipeline_mode = #tpu.pipeline_mode<synchronous>, transform_indices = @transform_1, window_bounds = array<i64: 4, 128>}, {pipeline_mode = #tpu.pipeline_mode<synchronous>, transform_indices = @transform_2, window_bounds = array<i64: 1, 128>}, {pipeline_mode = #tpu.pipeline_mode<synchronous>, transform_indices = @transform_3, window_bounds = array<i64: 128, 128>}, {pipeline_mode = #tpu.pipeline_mode<synchronous>, transform_indices = @transform_4, window_bounds = array<i64: 1, 128>}, {pipeline_mode = #tpu.pipeline_mode<synchronous>, transform_indices = @transform_5, window_bounds = array<i64: 128, 128>}, {pipeline_mode = #tpu.pipeline_mode<synchronous>, transform_indices = @transform_6, window_bounds = array<i64: 1, 128>}, {pipeline_mode = #tpu.pipeline_mode<synchronous>, transform_indices = @transform_7, window_bounds = array<i64: 128, 128>}, {pipeline_mode = #tpu.pipeline_mode<synchronous>, transform_indices = @transform_8, window_bounds = array<i64: 1, 128>}, {transform_indices = @transform_9, window_bounds = array<i64: 1>}, {transform_indices = @transform_10, window_bounds = array<i64: 32, 128>}]} {
    %c0 = arith.constant 0 : index
    %c0_0 = arith.constant 0 : index
    %0 = vector.load %arg2[%c0, %c0_0] : memref<4x128xbf16, #tpu.memory_space<vmem>>, vector<4x128xbf16>
    %c0_1 = arith.constant 0 : index
    %c0_2 = arith.constant 0 : index
    %1 = vector.load %arg3[%c0_1, %c0_2] : memref<1x128xf32, #tpu.memory_space<vmem>>, vector<1x128xf32>
    %c0_3 = arith.constant 0 : index
    %c0_4 = arith.constant 0 : index
    %2 = vector.load %arg4[%c0_3, %c0_4] : memref<128x128xbf16, #tpu.memory_space<vmem>>, vector<128x128xbf16>
    %c0_5 = arith.constant 0 : index
    %c0_6 = arith.constant 0 : index
    %3 = vector.load %arg5[%c0_5, %c0_6] : memref<1x128xf32, #tpu.memory_space<vmem>>, vector<1x128xf32>
    %c0_7 = arith.constant 0 : index
    %c0_8 = arith.constant 0 : index
    %4 = vector.load %arg6[%c0_7, %c0_8] : memref<128x128xbf16, #tpu.memory_space<vmem>>, vector<128x128xbf16>
    %c0_9 = arith.constant 0 : index
    %c0_10 = arith.constant 0 : index
    %5 = vector.load %arg7[%c0_9, %c0_10] : memref<1x128xf32, #tpu.memory_space<vmem>>, vector<1x128xf32>
    %c0_11 = arith.constant 0 : index
    %c0_12 = arith.constant 0 : index
    %6 = vector.load %arg8[%c0_11, %c0_12] : memref<128x128xbf16, #tpu.memory_space<vmem>>, vector<128x128xbf16>
    %c0_13 = arith.constant 0 : index
    %c0_14 = arith.constant 0 : index
    %7 = vector.load %arg9[%c0_13, %c0_14] : memref<1x128xf32, #tpu.memory_space<vmem>>, vector<1x128xf32>
    %c0_15 = arith.constant 0 : index
    %c0_16 = arith.constant 0 : index
    %8 = vector.load %arg1[%c0_15, %c0_16] : memref<32x4xbf16, #tpu.memory_space<vmem>>, vector<32x4xbf16>
    %cst = arith.constant dense<0.000000e+00> : vector<32x128xf32>
    %9 = tpu.matmul %8, %0, %cst {dimension_numbers = #tpu.dot_dimension_numbers<[1], [0], [0], [1], [0, 0, 1, 1], [], []>} : vector<32x4xbf16>, vector<4x128xbf16>, vector<32x128xf32> -> vector<32x128xf32>
    %10 = vector.broadcast %1 : vector<1x128xf32> to vector<32x128xf32>
    %11 = arith.addf %9, %10 : vector<32x128xf32>
    %12 = arith.truncf %11 : vector<32x128xf32> to vector<32x128xbf16>
    %cst_17 = arith.constant dense<0.000000e+00> : vector<32x128xf32>
    %13 = tpu.matmul %12, %4, %cst_17 {dimension_numbers = #tpu.dot_dimension_numbers<[1], [0], [0], [1], [0, 0, 1, 1], [], []>} : vector<32x128xbf16>, vector<128x128xbf16>, vector<32x128xf32> -> vector<32x128xf32>
    %14 = vector.broadcast %5 : vector<1x128xf32> to vector<32x128xf32>
    %15 = arith.addf %13, %14 : vector<32x128xf32>
    %16 = math.tanh %15 : vector<32x128xf32>
    %17 = arith.truncf %16 : vector<32x128xf32> to vector<32x128xbf16>
    %cst_18 = arith.constant dense<0.000000e+00> : vector<32x128xf32>
    %18 = tpu.matmul %17, %2, %cst_18 {dimension_numbers = #tpu.dot_dimension_numbers<[1], [0], [0], [1], [0, 0, 1, 1], [], []>} : vector<32x128xbf16>, vector<128x128xbf16>, vector<32x128xf32> -> vector<32x128xf32>
    %19 = vector.broadcast %3 : vector<1x128xf32> to vector<32x128xf32>
    %20 = arith.addf %18, %19 : vector<32x128xf32>
    %21 = math.tanh %20 : vector<32x128xf32>
    %22 = arith.addf %21, %11 : vector<32x128xf32>
    %23 = arith.truncf %22 : vector<32x128xf32> to vector<32x128xbf16>
    %cst_19 = arith.constant dense<0.000000e+00> : vector<32x128xf32>
    %24 = tpu.matmul %23, %4, %cst_19 {dimension_numbers = #tpu.dot_dimension_numbers<[1], [0], [0], [1], [0, 0, 1, 1], [], []>} : vector<32x128xbf16>, vector<128x128xbf16>, vector<32x128xf32> -> vector<32x128xf32>
    %25 = vector.broadcast %5 : vector<1x128xf32> to vector<32x128xf32>
    %26 = arith.addf %24, %25 : vector<32x128xf32>
    %27 = math.tanh %26 : vector<32x128xf32>
    %28 = arith.truncf %27 : vector<32x128xf32> to vector<32x128xbf16>
    %cst_20 = arith.constant dense<0.000000e+00> : vector<32x128xf32>
    %29 = tpu.matmul %28, %2, %cst_20 {dimension_numbers = #tpu.dot_dimension_numbers<[1], [0], [0], [1], [0, 0, 1, 1], [], []>} : vector<32x128xbf16>, vector<128x128xbf16>, vector<32x128xf32> -> vector<32x128xf32>
    %30 = vector.broadcast %3 : vector<1x128xf32> to vector<32x128xf32>
    %31 = arith.addf %29, %30 : vector<32x128xf32>
    %32 = math.tanh %31 : vector<32x128xf32>
    %33 = arith.addf %32, %22 : vector<32x128xf32>
    %34 = arith.truncf %33 : vector<32x128xf32> to vector<32x128xbf16>
    %cst_21 = arith.constant dense<0.000000e+00> : vector<32x128xf32>
    %35 = tpu.matmul %34, %4, %cst_21 {dimension_numbers = #tpu.dot_dimension_numbers<[1], [0], [0], [1], [0, 0, 1, 1], [], []>} : vector<32x128xbf16>, vector<128x128xbf16>, vector<32x128xf32> -> vector<32x128xf32>
    %36 = vector.broadcast %5 : vector<1x128xf32> to vector<32x128xf32>
    %37 = arith.addf %35, %36 : vector<32x128xf32>
    %38 = math.tanh %37 : vector<32x128xf32>
    %39 = arith.truncf %38 : vector<32x128xf32> to vector<32x128xbf16>
    %cst_22 = arith.constant dense<0.000000e+00> : vector<32x128xf32>
    %40 = tpu.matmul %39, %2, %cst_22 {dimension_numbers = #tpu.dot_dimension_numbers<[1], [0], [0], [1], [0, 0, 1, 1], [], []>} : vector<32x128xbf16>, vector<128x128xbf16>, vector<32x128xf32> -> vector<32x128xf32>
    %41 = vector.broadcast %3 : vector<1x128xf32> to vector<32x128xf32>
    %42 = arith.addf %40, %41 : vector<32x128xf32>
    %43 = math.tanh %42 : vector<32x128xf32>
    %44 = arith.addf %43, %33 : vector<32x128xf32>
    %45 = arith.truncf %44 : vector<32x128xf32> to vector<32x128xbf16>
    %cst_23 = arith.constant dense<0.000000e+00> : vector<32x128xf32>
    %46 = tpu.matmul %45, %6, %cst_23 {dimension_numbers = #tpu.dot_dimension_numbers<[1], [0], [0], [1], [0, 0, 1, 1], [], []>} : vector<32x128xbf16>, vector<128x128xbf16>, vector<32x128xf32> -> vector<32x128xf32>
    %47 = vector.broadcast %7 : vector<1x128xf32> to vector<32x128xf32>
    %48 = arith.addf %46, %47 : vector<32x128xf32>
    %49 = math.tanh %48 : vector<32x128xf32>
    %c0_24 = arith.constant 0 : index
    %50 = memref.load %arg10[%c0_24] : memref<1xf32, #tpu.memory_space<smem>>
    %51 = vector.broadcast %50 : f32 to vector<32x128xf32>
    %52 = arith.mulf %49, %51 : vector<32x128xf32>
    %c0_25 = arith.constant 0 : index
    %c0_26 = arith.constant 0 : index
    %53 = vector.load %arg11[%c0_25, %c0_26] : memref<32x128xf32, #tpu.memory_space<vmem>>, vector<32x128xf32>
    tpu.vector_store %arg11[%c0_25, %c0_26], %52 {strides = array<i32>} : memref<32x128xf32, #tpu.memory_space<vmem>>, vector<32x128xf32>,
    return
  }
  func.func @transform_0(%arg0: i32) -> (i32, i32) {
    %c0_i32 = arith.constant 0 : i32
    %c0_i32_0 = arith.constant 0 : i32
    return %arg0, %c0_i32 : i32, i32
  }
  func.func @transform_1(%arg0: i32) -> (i32, i32) {
    %c0_i32 = arith.constant 0 : i32
    %c0_i32_0 = arith.constant 0 : i32
    %c0_i32_1 = arith.constant 0 : i32
    return %c0_i32, %c0_i32_0 : i32, i32
  }
  func.func @transform_2(%arg0: i32) -> (i32, i32) {
    %c0_i32 = arith.constant 0 : i32
    %c0_i32_0 = arith.constant 0 : i32
    %c0_i32_1 = arith.constant 0 : i32
    return %c0_i32, %c0_i32_0 : i32, i32
  }
  func.func @transform_3(%arg0: i32) -> (i32, i32) {
    %c0_i32 = arith.constant 0 : i32
    %c0_i32_0 = arith.constant 0 : i32
    %c0_i32_1 = arith.constant 0 : i32
    return %c0_i32, %c0_i32_0 : i32, i32
  }
  func.func @transform_4(%arg0: i32) -> (i32, i32) {
    %c0_i32 = arith.constant 0 : i32
    %c0_i32_0 = arith.constant 0 : i32
    %c0_i32_1 = arith.constant 0 : i32
    return %c0_i32, %c0_i32_0 : i32, i32
  }
  func.func @transform_5(%arg0: i32) -> (i32, i32) {
    %c0_i32 = arith.constant 0 : i32
    %c0_i32_0 = arith.constant 0 : i32
    %c0_i32_1 = arith.constant 0 : i32
    return %c0_i32, %c0_i32_0 : i32, i32
  }
  func.func @transform_6(%arg0: i32) -> (i32, i32) {
    %c0_i32 = arith.constant 0 : i32
    %c0_i32_0 = arith.constant 0 : i32
    %c0_i32_1 = arith.constant 0 : i32
    return %c0_i32, %c0_i32_0 : i32, i32
  }
  func.func @transform_7(%arg0: i32) -> (i32, i32) {
    %c0_i32 = arith.constant 0 : i32
    %c0_i32_0 = arith.constant 0 : i32
    %c0_i32_1 = arith.constant 0 : i32
    return %c0_i32, %c0_i32_0 : i32, i32
  }
  func.func @transform_8(%arg0: i32) -> (i32, i32) {
    %c0_i32 = arith.constant 0 : i32
    %c0_i32_0 = arith.constant 0 : i32
    %c0_i32_1 = arith.constant 0 : i32
    return %c0_i32, %c0_i32_0 : i32, i32
  }
  func.func @transform_9(%arg0: i32) -> i32 {
    %c0_i32 = arith.constant 0 : i32
    %c0_i32_0 = arith.constant 0 : i32
    return %c0_i32 : i32
  }
  func.func @transform_10(%arg0: i32) -> (i32, i32) {
    %c0_i32 = arith.constant 0 : i32
    %c0_i32_0 = arith.constant 0 : i32
    return %arg0, %c0_i32 : i32, i32
  }
}

</mosaic_0001>

<llo_original>
// kernel: tpu_custom_call.1
$region0: #{tpu_custom_call.1}
  #allocation0 [shape = 'u32[]', space=smem, size = 0x4, offset = 0x4, fixed_abs, tag = 'smem constant byte address 0x4 - core index']
  #allocation1 [shape = 'u32[144,128]{1,0:T(1,128)}', space=vmem, size = 0x12000, scoped, tag = 'internal scratch']
  #allocation2 [shape = 'f32[1]{0:T(128)S(6)}', space=smem, size = 0x200, scoped, tag = 'scoped memory for tpu_custom_call.1']
  %s0 = inlined_call_operand.vmem [shape: bf16[64,4], index: 0, kind: input, shape index: {}]
  %s1 = inlined_call_operand.hbm [shape: bf16[4,128], index: 1, kind: input, shape index: {}]
  %s2 = inlined_call_operand.hbm [shape: f32[1,128], index: 2, kind: input, shape index: {}]
  %s3 = inlined_call_operand.hbm [shape: bf16[128,128], index: 3, kind: input, shape index: {}]
  %s4 = inlined_call_operand.hbm [shape: f32[1,128], index: 4, kind: input, shape index: {}]
  %s5 = inlined_call_operand.hbm [shape: bf16[128,128], index: 5, kind: input, shape index: {}]
  %s6 = inlined_call_operand.hbm [shape: f32[1,128], index: 6, kind: input, shape index: {}]
  %s7 = inlined_call_operand.vmem [shape: bf16[128,128], index: 7, kind: input, shape index: {}]
  %s8 = inlined_call_operand.vmem [shape: f32[1,128], index: 8, kind: input, shape index: {}]
  %s9 = inlined_call_operand.<no memory space> [shape: f32[1], index: 9, kind: input, shape index: {}]
  %s10 = inlined_call_operand.hbm [shape: f32[64,128], index: 10, kind: output, shape index: {}]
  %s11 = sld [smem:[#allocation0]]
  $region97: #{tpu_custom_call.1} parent=0
    _
  %s13 = ssub.s32 1, %s11
  %s14 = scalar_select 0, %s13, %s11
  %15 = sst [smem:[#allocation2]] %s9
  $region1: #{tpu_custom_call.1} parent=0
    #allocation3 [shape = 'u8[1024]{0}', space=vmem, size = 0x400, scoped, tag = 'input window, operand 1, single buffered']
    #allocation4 [shape = 's32[2]{0}', space=sflag, size = 0x8, scoped, tag = 'scoped memory for tpu_custom_call.1']
    #allocation5 [shape = 's32[2]{0}', space=sflag, size = 0x8, scoped, tag = 'scoped memory for tpu_custom_call.1']
    #allocation6 [shape = 'u8[512]{0}', space=vmem, size = 0x400, scoped, tag = 'input window, operand 2, single buffered']
    #allocation7 [shape = 's32[1]{0}', space=sflag, size = 0x4, scoped, tag = 'scoped memory for tpu_custom_call.1']
    #allocation8 [shape = 'u8[32768]{0}', space=vmem, size = 0x8000, scoped, tag = 'input window, operand 3, single buffered']
    #allocation9 [shape = 'u8[512]{0}', space=vmem, size = 0x400, scoped, tag = 'input window, operand 4, single buffered']
    #allocation10 [shape = 's32[1]{0}', space=sflag, size = 0x4, scoped, tag = 'scoped memory for tpu_custom_call.1']
    #allocation11 [shape = 'u8[32768]{0}', space=vmem, size = 0x8000, scoped, tag = 'input window, operand 5, single buffered']
    #allocation12 [shape = 'u8[512]{0}', space=vmem, size = 0x400, scoped, tag = 'input window, operand 6, single buffered']
    #allocation13 [shape = 's32[1]{0}', space=sflag, size = 0x4, scoped, tag = 'scoped memory for tpu_custom_call.1']
    #allocation14 [shape = 'u8[32768]{0}', space=vmem, size = 0x8000, scoped, tag = 'output window, operand 0']
    %16 = vsyncpa [#allocation4], 0
    %17 = vsyncpa [#allocation7], 0
    %18 = vsyncpa [#allocation10], 0
    %19 = vsyncpa [#allocation13], 0
    %20 = vsyncpa [#allocation5], 0
    %s21 = scalar_lea.sflag [#allocation5], 1
    %22 = vsyncpa %s21, 0
    loop: start=0, step=1, limit=4
    $region2: #{tpu_custom_call.1} parent=1 // loop_pre_header
      _
    $region3: #{tpu_custom_call.1} parent=1 // loop_header
      %s24 = sphi 0, %s28
      %p25 = scmp.ge.s32.totalorder %s24, 4
      %s34 = sphi 0, %s36
      %s37 = sphi 0, %s34
      %s38 = sphi 0, %s37
      %s54 = sphi 0, %s38
      %s58 = sphi 0, %s58
      %s60 = sphi 0, %s58
      %s61 = sphi 0, %s60
      %s75 = sphi 0, %s61
      %s79 = sphi 0, %s79
      %s81 = sphi 0, %s79
      %s82 = sphi 0, %s81
      %s96 = sphi 0, %s82
      %s100 = sphi 0, %s100
      %s102 = sphi 0, %s100
      %s103 = sphi 0, %s102
      %s117 = sphi 0, %s103
      %s121 = sphi 0, %s121
      %s123 = sphi 0, %s121
      %s124 = sphi 0, %s123
      %s138 = sphi 0, %s124
      %s142 = sphi 0, %s142
      %s144 = sphi 0, %s142
      %s145 = sphi 0, %s144
      %s159 = sphi 0, %s145
      %s163 = sphi 0, %s163
      %s165 = sphi 0, %s163
      %s166 = sphi 0, %s165
      %s180 = sphi 0, %s166
      %s184 = sphi 0, %s184
      %s186 = sphi 0, %s184
      %s187 = sphi 0, %s186
      %s201 = sphi 0, %s187
      %s205 = sphi 0, %s205
      %s207 = sphi 0, %s205
      %s208 = sphi 0, %s207
      %s222 = sphi 0, %s208
      %s226 = sphi 0, %s226
      %s228 = sphi 0, %s226
      %s229 = sphi 0, %s228
      %s243 = sphi 0, %s229
      %s249 = sphi 0, %s251
      %s252 = sphi 0, %s249
      %s253 = sphi 0, %s252
      %s269 = sphi 0, %s253
    $region4: #{tpu_custom_call.1} parent=1 // loop_header_branch
      %27 = sbr.rel (%p25) target = $region8
    $region5: #{tpu_custom_call.1} parent=1 // loop_body
      %s29 = ssub.s32 %s24, 1
      %s30 = ssub.s32 %s24, 2
      %s31 = sadd.s32 %s24, 1
      %s32 = ssub.s32 %s24, %s31
      %p33 = scmp.eq.s32.totalorder %s32, 0
      %s35 = sadd.s32 %s34, 1
      %s36 = scalar_select %p33, %s34, %s35
      %p39 = pneg %p33
      %p40 = scmp.eq.s32.totalorder %s24, 1
      %p41 = por %p39, %p40
      %p42 = scmp.ne.s32.totalorder %s34, %s37
      %p43 = scmp.eq.s32.totalorder %s24, 0
      %p44 = por %p42, %p43
      %p45 = scmp.ne.s32.totalorder %s34, %s37
      %p46 = scmp.eq.s32.totalorder %s29, 1
      %p47 = por %p45, %p46
      %p48 = scmp.ne.s32.totalorder %s37, %s38
      %p49 = scmp.eq.s32.totalorder %s29, 0
      %p50 = por %p48, %p49
      %p51 = scmp.ne.s32.totalorder %s37, %s38
      %p52 = scmp.eq.s32.totalorder %s30, 1
      %p53 = por %p51, %p52
      %p55 = scmp.ne.s32.totalorder %s38, %s54
      %p56 = scmp.eq.s32.totalorder %s30, 0
      %p57 = por %p55, %p56
      %s59 = sadd.s32 %s58, 1
      %p62 = scmp.eq.s32.totalorder %s24, 1
      %p63 = scmp.ne.s32.totalorder %s58, %s60
      %p64 = scmp.eq.s32.totalorder %s24, 0
      %p65 = por %p63, %p64
      %p66 = scmp.ne.s32.totalorder %s58, %s60
      %p67 = scmp.eq.s32.totalorder %s29, 1
      %p68 = por %p66, %p67
      %p69 = scmp.ne.s32.totalorder %s60, %s61
      %p70 = scmp.eq.s32.totalorder %s29, 0
      %p71 = por %p69, %p70
      %p72 = scmp.ne.s32.totalorder %s60, %s61
      %p73 = scmp.eq.s32.totalorder %s30, 1
      %p74 = por %p72, %p73
      %p76 = scmp.ne.s32.totalorder %s61, %s75
      %p77 = scmp.eq.s32.totalorder %s30, 0
      %p78 = por %p76, %p77
      %s80 = sadd.s32 %s79, 1
      %p83 = scmp.eq.s32.totalorder %s24, 1
      %p84 = scmp.ne.s32.totalorder %s79, %s81
      %p85 = scmp.eq.s32.totalorder %s24, 0
      %p86 = por %p84, %p85
      %p87 = scmp.ne.s32.totalorder %s79, %s81
      %p88 = scmp.eq.s32.totalorder %s29, 1
      %p89 = por %p87, %p88
      %p90 = scmp.ne.s32.totalorder %s81, %s82
      %p91 = scmp.eq.s32.totalorder %s29, 0
      %p92 = por %p90, %p91
      %p93 = scmp.ne.s32.totalorder %s81, %s82
      %p94 = scmp.eq.s32.totalorder %s30, 1
      %p95 = por %p93, %p94
      %p97 = scmp.ne.s32.totalorder %s82, %s96
      %p98 = scmp.eq.s32.totalorder %s30, 0
      %p99 = por %p97, %p98
      %s101 = sadd.s32 %s100, 1
      %p104 = scmp.eq.s32.totalorder %s24, 1
      %p105 = scmp.ne.s32.totalorder %s100, %s102
      %p106 = scmp.eq.s32.totalorder %s24, 0
      %p107 = por %p105, %p106
      %p108 = scmp.ne.s32.totalorder %s100, %s102
      %p109 = scmp.eq.s32.totalorder %s29, 1
      %p110 = por %p108, %p109
      %p111 = scmp.ne.s32.totalorder %s102, %s103
      %p112 = scmp.eq.s32.totalorder %s29, 0
      %p113 = por %p111, %p112
      %p114 = scmp.ne.s32.totalorder %s102, %s103
      %p115 = scmp.eq.s32.totalorder %s30, 1
      %p116 = por %p114, %p115
      %p118 = scmp.ne.s32.totalorder %s103, %s117
      %p119 = scmp.eq.s32.totalorder %s30, 0
      %p120 = por %p118, %p119
      %s122 = sadd.s32 %s121, 1
      %p125 = scmp.eq.s32.totalorder %s24, 1
      %p126 = scmp.ne.s32.totalorder %s121, %s123
      %p127 = scmp.eq.s32.totalorder %s24, 0
      %p128 = por %p126, %p127
      %p129 = scmp.ne.s32.totalorder %s121, %s123
      %p130 = scmp.eq.s32.totalorder %s29, 1
      %p131 = por %p129, %p130
      %p132 = scmp.ne.s32.totalorder %s123, %s124
      %p133 = scmp.eq.s32.totalorder %s29, 0
      %p134 = por %p132, %p133
      %p135 = scmp.ne.s32.totalorder %s123, %s124
      %p136 = scmp.eq.s32.totalorder %s30, 1
      %p137 = por %p135, %p136
      %p139 = scmp.ne.s32.totalorder %s124, %s138
      %p140 = scmp.eq.s32.totalorder %s30, 0
      %p141 = por %p139, %p140
      %s143 = sadd.s32 %s142, 1
      %p146 = scmp.eq.s32.totalorder %s24, 1
      %p147 = scmp.ne.s32.totalorder %s142, %s144
      %p148 = scmp.eq.s32.totalorder %s24, 0
      %p149 = por %p147, %p148
      %p150 = scmp.ne.s32.totalorder %s142, %s144
      %p151 = scmp.eq.s32.totalorder %s29, 1
      %p152 = por %p150, %p151
      %p153 = scmp.ne.s32.totalorder %s144, %s145
      %p154 = scmp.eq.s32.totalorder %s29, 0
      %p155 = por %p153, %p154
      %p156 = scmp.ne.s32.totalorder %s144, %s145
      %p157 = scmp.eq.s32.totalorder %s30, 1
      %p158 = por %p156, %p157
      %p160 = scmp.ne.s32.totalorder %s145, %s159
      %p161 = scmp.eq.s32.totalorder %s30, 0
      %p162 = por %p160, %p161
      %s164 = sadd.s32 %s163, 1
      %p167 = scmp.eq.s32.totalorder %s24, 1
      %p168 = scmp.ne.s32.totalorder %s163, %s165
      %p169 = scmp.eq.s32.totalorder %s24, 0
      %p170 = por %p168, %p169
      %p171 = scmp.ne.s32.totalorder %s163, %s165
      %p172 = scmp.eq.s32.totalorder %s29, 1
      %p173 = por %p171, %p172
      %p174 = scmp.ne.s32.totalorder %s165, %s166
      %p175 = scmp.eq.s32.totalorder %s29, 0
      %p176 = por %p174, %p175
      %p177 = scmp.ne.s32.totalorder %s165, %s166
      %p178 = scmp.eq.s32.totalorder %s30, 1
      %p179 = por %p177, %p178
      %p181 = scmp.ne.s32.totalorder %s166, %s180
      %p182 = scmp.eq.s32.totalorder %s30, 0
      %p183 = por %p181, %p182
      %s185 = sadd.s32 %s184, 1
      %p188 = scmp.eq.s32.totalorder %s24, 1
      %p189 = scmp.ne.s32.totalorder %s184, %s186
      %p190 = scmp.eq.s32.totalorder %s24, 0
      %p191 = por %p189, %p190
      %p192 = scmp.ne.s32.totalorder %s184, %s186
      %p193 = scmp.eq.s32.totalorder %s29, 1
      %p194 = por %p192, %p193
      %p195 = scmp.ne.s32.totalorder %s186, %s187
      %p196 = scmp.eq.s32.totalorder %s29, 0
      %p197 = por %p195, %p196
      %p198 = scmp.ne.s32.totalorder %s186, %s187
      %p199 = scmp.eq.s32.totalorder %s30, 1
      %p200 = por %p198, %p199
      %p202 = scmp.ne.s32.totalorder %s187, %s201
      %p203 = scmp.eq.s32.totalorder %s30, 0
      %p204 = por %p202, %p203
      %s206 = sadd.s32 %s205, 1
      %p209 = scmp.eq.s32.totalorder %s24, 1
      %p210 = scmp.ne.s32.totalorder %s205, %s207
      %p211 = scmp.eq.s32.totalorder %s24, 0
      %p212 = por %p210, %p211
      %p213 = scmp.ne.s32.totalorder %s205, %s207
      %p214 = scmp.eq.s32.totalorder %s29, 1
      %p215 = por %p213, %p214
      %p216 = scmp.ne.s32.totalorder %s207, %s208
      %p217 = scmp.eq.s32.totalorder %s29, 0
      %p218 = por %p216, %p217
      %p219 = scmp.ne.s32.totalorder %s207, %s208
      %p220 = scmp.eq.s32.totalorder %s30, 1
      %p221 = por %p219, %p220
      %p223 = scmp.ne.s32.totalorder %s208, %s222
      %p224 = scmp.eq.s32.totalorder %s30, 0
      %p225 = por %p223, %p224
      %s227 = sadd.s32 %s226, 1
      %p230 = scmp.eq.s32.totalorder %s24, 1
      %p231 = scmp.ne.s32.totalorder %s226, %s228
      %p232 = scmp.eq.s32.totalorder %s24, 0
      %p233 = por %p231, %p232
      %p234 = scmp.ne.s32.totalorder %s226, %s228
      %p235 = scmp.eq.s32.totalorder %s29, 1
      %p236 = por %p234, %p235
      %p237 = scmp.ne.s32.totalorder %s228, %s229
      %p238 = scmp.eq.s32.totalorder %s29, 0
      %p239 = por %p237, %p238
      %p240 = scmp.ne.s32.totalorder %s228, %s229
      %p241 = scmp.eq.s32.totalorder %s30, 1
      %p242 = por %p240, %p241
      %p244 = scmp.ne.s32.totalorder %s229, %s243
      %p245 = scmp.eq.s32.totalorder %s30, 0
      %p246 = por %p244, %p245
      %s247 = ssub.s32 %s24, %s31
      %p248 = scmp.eq.s32.totalorder %s247, 0
      %s250 = sadd.s32 %s249, 1
      %s251 = scalar_select %p248, %s249, %s250
      %p254 = pneg %p248
      %p255 = scmp.eq.s32.totalorder %s24, 1
      %p256 = por %p254, %p255
      %p257 = scmp.ne.s32.totalorder %s249, %s252
      %p258 = scmp.eq.s32.totalorder %s24, 0
      %p259 = por %p257, %p258
      %p260 = scmp.ne.s32.totalorder %s249, %s252
      %p261 = scmp.eq.s32.totalorder %s29, 1
      %p262 = por %p260, %p261
      %p263 = scmp.ne.s32.totalorder %s252, %s253
      %p264 = scmp.eq.s32.totalorder %s29, 0
      %p265 = por %p263, %p264
      %p266 = scmp.ne.s32.totalorder %s252, %s253
      %p267 = scmp.eq.s32.totalorder %s30, 1
      %p268 = por %p266, %p267
      %p270 = scmp.ne.s32.totalorder %s253, %s269
      %p271 = scmp.eq.s32.totalorder %s30, 0
      %p272 = por %p270, %p271
      %p273 = scmp.le.s32.totalorder 1, %s24
      %p274 = scmp.lt.s32.totalorder %s24, 3
      %p275 = pnand %p273, %p274
      %p276 = pneg %p275
      // Predicated region
      $region9: #{tpu_custom_call.1} parent=5 // pred_check
        _
      $region10: #{tpu_custom_call.1} parent=5 // pred_check_branch
        %278 = sbr.rel (%p275) target = $region12
      $region11: #{tpu_custom_call.1} parent=5 // pred_region
        %s279 = ssub.s32 %s24, 1
        // Predicated region
        $region13: #{tpu_custom_call.1} parent=11 // pred_check
          %p280 = pneg %p71
        $region14: #{tpu_custom_call.1} parent=11 // pred_check_branch
          %282 = sbr.rel (%p280) target = $region16
        $region15: #{tpu_custom_call.1} parent=11 // pred_region
          %s284 = ssub.s32 32, 32
          %285 = vsyncadd [#allocation4], %s284
          %s287 = sshll.u32 [#allocation3], 4
          %s288 = int_to_ptr.vmem [resolvable:$true] %s287
          %290 = dma.hbm_to_vmem [thread:$0]  %s1, 32, %s288, [#allocation4]
        $region16: #{tpu_custom_call.1} parent=11 // pred_fallthru
          _
        // Predicated region
        $region17: #{tpu_custom_call.1} parent=11 // pred_check
          %p291 = pneg %p92
        $region18: #{tpu_custom_call.1} parent=11 // pred_check_branch
          %293 = sbr.rel (%p291) target = $region20
        $region19: #{tpu_custom_call.1} parent=11 // pred_region
          %s295 = ssub.s32 16, 16
          %296 = vsyncadd [#allocation7], %s295
          %s298 = sshll.u32 [#allocation6], 4
          %s299 = int_to_ptr.vmem [resolvable:$true] %s298
          %301 = dma.hbm_to_vmem [thread:$0]  %s2, 16, %s299, [#allocation7]
        $region20: #{tpu_custom_call.1} parent=11 // pred_fallthru
          _
        // Predicated region
        $region21: #{tpu_custom_call.1} parent=11 // pred_check
          %p302 = pneg %p113
        $region22: #{tpu_custom_call.1} parent=11 // pred_check_branch
          %304 = sbr.rel (%p302) target = $region24
        $region23: #{tpu_custom_call.1} parent=11 // pred_region
          %s306 = ssub.s32 1024, 1024
          %307 = vsyncadd [#allocation7], %s306
          %s308 = sshll.u32 [#allocation8], 4
          %s309 = int_to_ptr.vmem [resolvable:$true] %s308
          %314 = dma.hbm_to_vmem [thread:$0]  %s3, 1024, %s309, [#allocation7], 64, 64, 4
        $region24: #{tpu_custom_call.1} parent=11 // pred_fallthru
          _
        // Predicated region
        $region25: #{tpu_custom_call.1} parent=11 // pred_check
          %p315 = pneg %p134
        $region26: #{tpu_custom_call.1} parent=11 // pred_check_branch
          %317 = sbr.rel (%p315) target = $region28
        $region27: #{tpu_custom_call.1} parent=11 // pred_region
          %s319 = ssub.s32 16, 16
          %320 = vsyncadd [#allocation10], %s319
          %s322 = sshll.u32 [#allocation9], 4
          %s323 = int_to_ptr.vmem [resolvable:$true] %s322
          %325 = dma.hbm_to_vmem [thread:$0]  %s4, 16, %s323, [#allocation10]
        $region28: #{tpu_custom_call.1} parent=11 // pred_fallthru
          _
        // Predicated region
        $region29: #{tpu_custom_call.1} parent=11 // pred_check
          %p326 = pneg %p155
        $region30: #{tpu_custom_call.1} parent=11 // pred_check_branch
          %328 = sbr.rel (%p326) target = $region32
        $region31: #{tpu_custom_call.1} parent=11 // pred_region
          %s330 = ssub.s32 1024, 1024
          %331 = vsyncadd [#allocation10], %s330
          %s332 = sshll.u32 [#allocation11], 4
          %s333 = int_to_ptr.vmem [resolvable:$true] %s332
          %338 = dma.hbm_to_vmem [thread:$0]  %s5, 1024, %s333, [#allocation10], 64, 64, 4
        $region32: #{tpu_custom_call.1} parent=11 // pred_fallthru
          _
        // Predicated region
        $region33: #{tpu_custom_call.1} parent=11 // pred_check
          %p339 = pneg %p176
        $region34: #{tpu_custom_call.1} parent=11 // pred_check_branch
          %341 = sbr.rel (%p339) target = $region36
        $region35: #{tpu_custom_call.1} parent=11 // pred_region
          %s343 = ssub.s32 16, 16
          %344 = vsyncadd [#allocation13], %s343
          %s346 = sshll.u32 [#allocation12], 4
          %s347 = int_to_ptr.vmem [resolvable:$true] %s346
          %349 = dma.hbm_to_vmem [thread:$0]  %s6, 16, %s347, [#allocation13]
        $region36: #{tpu_custom_call.1} parent=11 // pred_fallthru
          _
        // Predicated region
        $region37: #{tpu_custom_call.1} parent=11 // pred_check
          %p350 = pneg %p197
        $region38: #{tpu_custom_call.1} parent=11 // pred_check_branch
          %352 = sbr.rel (%p350) target = $region40
        $region39: #{tpu_custom_call.1} parent=11 // pred_region
          _
        $region40: #{tpu_custom_call.1} parent=11 // pred_fallthru
          _
        // Predicated region
        $region41: #{tpu_custom_call.1} parent=11 // pred_check
          %p353 = pneg %p218
        $region42: #{tpu_custom_call.1} parent=11 // pred_check_branch
          %355 = sbr.rel (%p353) target = $region44
        $region43: #{tpu_custom_call.1} parent=11 // pred_region
          _
        $region44: #{tpu_custom_call.1} parent=11 // pred_fallthru
          _
        // Predicated region
        $region45: #{tpu_custom_call.1} parent=11 // pred_check
          %p356 = pneg %p239
        $region46: #{tpu_custom_call.1} parent=11 // pred_check_branch
          %358 = sbr.rel (%p356) target = $region48
        $region47: #{tpu_custom_call.1} parent=11 // pred_region
          _
        $region48: #{tpu_custom_call.1} parent=11 // pred_fallthru
          _
      $region12: #{tpu_custom_call.1} parent=5 // pred_fallthru
        _
      %p359 = scmp.lt.s32.totalorder %s24, 2
      // Predicated region
      $region49: #{tpu_custom_call.1} parent=5 // pred_check
        %p360 = pneg %p359
      $region50: #{tpu_custom_call.1} parent=5 // pred_check_branch
        %362 = sbr.rel (%p360) target = $region52
      $region51: #{tpu_custom_call.1} parent=5 // pred_region
        // Predicated region
        $region53: #{tpu_custom_call.1} parent=51 // pred_check
          %p363 = pneg %p44
        $region54: #{tpu_custom_call.1} parent=51 // pred_check_branch
          %365 = sbr.rel (%p363) target = $region56
        $region55: #{tpu_custom_call.1} parent=51 // pred_region
          %s366 = smul.u32 4, %s24
          %p367 = scmp.lt.s32.totalorder %s366, 7
          %s368 = scalar_select %p367, %s366, 7
          %s369 = smul.addr %s368, 4
          %s370 = scalar_lea.vmem %s0, %s369
          %s371 = smul.u32 4, %s24
        $region56: #{tpu_custom_call.1} parent=51 // pred_fallthru
          _
      $region52: #{tpu_custom_call.1} parent=5 // pred_fallthru
        _
      %p372 = scmp.le.s32.totalorder 1, %s24
      %p373 = scmp.lt.s32.totalorder %s24, 3
      %p374 = pnand %p372, %p373
      %p375 = pneg %p374
      // Predicated region
      $region57: #{tpu_custom_call.1} parent=5 // pred_check
        _
      $region58: #{tpu_custom_call.1} parent=5 // pred_check_branch
        %377 = sbr.rel (%p374) target = $region60
      $region59: #{tpu_custom_call.1} parent=5 // pred_region
        %s378 = ssub.s32 %s24, 1
        // Predicated region
        $region61: #{tpu_custom_call.1} parent=59 // pred_check
          %p379 = pneg %p71
        $region62: #{tpu_custom_call.1} parent=59 // pred_check_branch
          %381 = sbr.rel (%p379) target = $region64
        $region63: #{tpu_custom_call.1} parent=59 // pred_region
          %382 = dma.done [#allocation4], 32
        $region64: #{tpu_custom_call.1} parent=59 // pred_fallthru
          _
        // Predicated region
        $region65: #{tpu_custom_call.1} parent=59 // pred_check
          %p383 = pneg %p92
        $region66: #{tpu_custom_call.1} parent=59 // pred_check_branch
          %385 = sbr.rel (%p383) target = $region68
        $region67: #{tpu_custom_call.1} parent=59 // pred_region
          %386 = dma.done [#allocation7], 16
        $region68: #{tpu_custom_call.1} parent=59 // pred_fallthru
          _
        // Predicated region
        $region69: #{tpu_custom_call.1} parent=59 // pred_check
          %p387 = pneg %p113
        $region70: #{tpu_custom_call.1} parent=59 // pred_check_branch
          %389 = sbr.rel (%p387) target = $region72
        $region71: #{tpu_custom_call.1} parent=59 // pred_region
          %390 = dma.done [#allocation7], 1024
        $region72: #{tpu_custom_call.1} parent=59 // pred_fallthru
          _
        // Predicated region
        $region73: #{tpu_custom_call.1} parent=59 // pred_check
          %p391 = pneg %p134
        $region74: #{tpu_custom_call.1} parent=59 // pred_check_branch
          %393 = sbr.rel (%p391) target = $region76
        $region75: #{tpu_custom_call.1} parent=59 // pred_region
          %394 = dma.done [#allocation10], 16
        $region76: #{tpu_custom_call.1} parent=59 // pred_fallthru
          _
        // Predicated region
        $region77: #{tpu_custom_call.1} parent=59 // pred_check
          %p395 = pneg %p155
        $region78: #{tpu_custom_call.1} parent=59 // pred_check_branch
          %397 = sbr.rel (%p395) target = $region80
        $region79: #{tpu_custom_call.1} parent=59 // pred_region
          %398 = dma.done [#allocation10], 1024
        $region80: #{tpu_custom_call.1} parent=59 // pred_fallthru
          _
        // Predicated region
        $region81: #{tpu_custom_call.1} parent=59 // pred_check
          %p399 = pneg %p176
        $region82: #{tpu_custom_call.1} parent=59 // pred_check_branch
          %401 = sbr.rel (%p399) target = $region84
        $region83: #{tpu_custom_call.1} parent=59 // pred_region
          %402 = dma.done [#allocation13], 16
        $region84: #{tpu_custom_call.1} parent=59 // pred_fallthru
          _
        %s403 = smul.u32 4, %s29
        %p404 = scmp.lt.s32.totalorder %s403, 7
        %s405 = scalar_select %p404, %s403, 7
        %s406 = smul.addr %s405, 4
        %s407 = scalar_lea.vmem %s0, %s406
        %p408 = pneg %p50
        %p409 = pneg %p47
        %p410 = pneg %p71
        %p411 = pneg %p68
        %p412 = pneg %p92
        %p413 = pneg %p89
        %p414 = pneg %p113
        %p415 = pneg %p110
        %p416 = pneg %p134
        %p417 = pneg %p131
        %p418 = pneg %p155
        %p419 = pneg %p152
        %p420 = pneg %p176
        %p421 = pneg %p173
        %p422 = pneg %p197
        %p423 = pneg %p194
        %p424 = pneg %p218
        %p425 = pneg %p215
        %p426 = pneg %p239
        %p427 = pneg %p236
        %p428 = pneg %p265
        %p429 = pneg %p262
        %s430 = sand.u32 %s252, 1
        %s431 = scalar_lea.sflag [#allocation5], %s430
        %s432 = sand.u32 %s252, 1
        %s433 = smul.addr %s432, 32
        %s434 = scalar_lea.vmem [#allocation14], %s433
        %s435 = smul.u32 4, %s29
        %p436 = scmp.lt.s32.totalorder %s435, 7
        %s437 = scalar_select %p436, %s435, 7
        %s438 = smul.addr %s437, 4
        %s439 = scalar_lea.vmem %s0, %s438
        %s440 = smul.u32 4, %s29
        %s441 = smul.u32 4, %s29
        %v443 = vld [vmem:[#allocation3] sm:$0x3]
        %v444 = vld [vmem:[#allocation6] sm:$0x1]
        %v445 = vld [vmem:[#allocation8] sm:$0xf]
        %v446 = vld [vmem:[#allocation8 + $0x4] sm:$0xf]
        %v447 = vld [vmem:[#allocation8 + $0x8] sm:$0xf]
        %v448 = vld [vmem:[#allocation8 + $0xc] sm:$0xf]
        %v449 = vld [vmem:[#allocation8 + $0x10] sm:$0xf]
        %v450 = vld [vmem:[#allocation8 + $0x14] sm:$0xf]
        %v451 = vld [vmem:[#allocation8 + $0x18] sm:$0xf]
        %v452 = vld [vmem:[#allocation8 + $0x1c] sm:$0xf]
        %v453 = vld [vmem:[#allocation8 + $0x20] sm:$0xf]
        %v454 = vld [vmem:[#allocation8 + $0x24] sm:$0xf]
        %v455 = vld [vmem:[#allocation8 + $0x28] sm:$0xf]
        %v456 = vld [vmem:[#allocation8 + $0x2c] sm:$0xf]
        %v457 = vld [vmem:[#allocation8 + $0x30] sm:$0xf]
        %v458 = vld [vmem:[#allocation8 + $0x34] sm:$0xf]
        %v459 = vld [vmem:[#allocation8 + $0x38] sm:$0xf]
        %v460 = vld [vmem:[#allocation8 + $0x3c] sm:$0xf]
        %v461 = vld [vmem:[#allocation9] sm:$0x1]
        %v462 = vld [vmem:[#allocation11] sm:$0xf]
        %v463 = vld [vmem:[#allocation11 + $0x4] sm:$0xf]
        %v464 = vld [vmem:[#allocation11 + $0x8] sm:$0xf]
        %v465 = vld [vmem:[#allocation11 + $0xc] sm:$0xf]
        %v466 = vld [vmem:[#allocation11 + $0x10] sm:$0xf]
        %v467 = vld [vmem:[#allocation11 + $0x14] sm:$0xf]
        %v468 = vld [vmem:[#allocation11 + $0x18] sm:$0xf]
        %v469 = vld [vmem:[#allocation11 + $0x1c] sm:$0xf]
        %v470 = vld [vmem:[#allocation11 + $0x20] sm:$0xf]
        %v471 = vld [vmem:[#allocation11 + $0x24] sm:$0xf]
        %v472 = vld [vmem:[#allocation11 + $0x28] sm:$0xf]
        %v473 = vld [vmem:[#allocation11 + $0x2c] sm:$0xf]
        %v474 = vld [vmem:[#allocation11 + $0x30] sm:$0xf]
        %v475 = vld [vmem:[#allocation11 + $0x34] sm:$0xf]
        %v476 = vld [vmem:[#allocation11 + $0x38] sm:$0xf]
        %v477 = vld [vmem:[#allocation11 + $0x3c] sm:$0xf]
        %v478 = vld [vmem:[#allocation12] sm:$0x1]
        %v479 = vld [vmem:[%s7] sm:$0xf]
        %v480 = vld [vmem:[%s7 + $0x4] sm:$0xf]
        %v481 = vld [vmem:[%s7 + $0x8] sm:$0xf]
        %v482 = vld [vmem:[%s7 + $0xc] sm:$0xf]
        %v483 = vld [vmem:[%s7 + $0x10] sm:$0xf]
        %v484 = vld [vmem:[%s7 + $0x14] sm:$0xf]
        %v485 = vld [vmem:[%s7 + $0x18] sm:$0xf]
        %v486 = vld [vmem:[%s7 + $0x1c] sm:$0xf]
        %v487 = vld [vmem:[%s7 + $0x20] sm:$0xf]
        %v488 = vld [vmem:[%s7 + $0x24] sm:$0xf]
        %v489 = vld [vmem:[%s7 + $0x28] sm:$0xf]
        %v490 = vld [vmem:[%s7 + $0x2c] sm:$0xf]
        %v491 = vld [vmem:[%s7 + $0x30] sm:$0xf]
        %v492 = vld [vmem:[%s7 + $0x34] sm:$0xf]
        %v493 = vld [vmem:[%s7 + $0x38] sm:$0xf]
        %v494 = vld [vmem:[%s7 + $0x3c] sm:$0xf]
        %v495 = vld [vmem:[%s8] sm:$0x1]
        %v496 = vld [vmem:[%s439] sm:$0xf]
        %v497 = vld [vmem:[%s439 + $0x4] sm:$0xf]
        %v498 = vld [vmem:[%s439 + $0x8] sm:$0xf]
        %v499 = vld [vmem:[%s439 + $0xc] sm:$0xf]
        %v501 = vlaneseq
        %v502 = vshrl.u32 %v501, 7
        %v503 = vsub.s32 0, %v502
        %v504 = vrot.slane %v444, %v503
        %v510 = vunpack.c.l.b16 %v496
        %v511 = vunpack.c.l.b16 %v497
        %v512 = vunpack.c.l.b16 %v498
        %v513 = vunpack.c.l.b16 %v499
        %v514 = vpack.c.b16 %v511, %v510
        %v515 = vpack.c.b16 %v513, %v512
        %vm516 = vcmask 31744
        %v518 = vsel %vm516, %v514, 0
        %v521 = vsel %vm516, %v515, 0
        %vm523 = vcmask 1041408
        %v525 = vsel %vm523, %v443, 0
        %527 = vmatprep.subr.bf16.mxu0 0
        %528 = vmatpush1.bf16.msra.mxu0 %v525
        %529 = vmatprep.subr.bf16.mxu0 0
        %530 = vmatpush1.bf16.msra.mxu0 0
        %531 = vmatprep.subr.bf16.mxu0 0
        %532 = vmatpush1.bf16.msra.mxu0 0
        %533 = vmatprep.subr.bf16.mxu0 0
        %534 = vmatpush1.bf16.msra.mxu0 0
        %535 = vmatprep.subr.bf16.mxu0 0
        %536 = vmatpush1.bf16.msra.mxu0 0
        %537 = vmatprep.subr.bf16.mxu0 0
        %538 = vmatpush1.bf16.msra.mxu0 0
        %539 = vmatprep.subr.bf16.mxu0 0
        %540 = vmatpush1.bf16.msra.mxu0 0
        %541 = vmatprep.subr.bf16.mxu0 0
        %542 = vmatpush1.bf16.msra.mxu0 0
        %543 = vmatprep.subr.bf16.mxu0 0
        %544 = vmatpush1.bf16.msra.mxu0 0
        %545 = vmatprep.subr.bf16.mxu0 0
        %546 = vmatpush1.bf16.msra.mxu0 0
        %547 = vmatprep.subr.bf16.mxu0 0
        %548 = vmatpush1.bf16.msra.mxu0 0
        %549 = vmatprep.subr.bf16.mxu0 0
        %550 = vmatpush1.bf16.msra.mxu0 0
        %551 = vmatprep.subr.bf16.mxu0 0
        %552 = vmatpush1.bf16.msra.mxu0 0
        %553 = vmatprep.subr.bf16.mxu0 0
        %554 = vmatpush1.bf16.msra.mxu0 0
        %555 = vmatprep.subr.bf16.mxu0 0
        %556 = vmatpush1.bf16.msra.mxu0 0
        %557 = vmatprep.subr.bf16.mxu0 0
        %558 = vmatpush1.bf16.msra.mxu0 0
        %559 = vmatprep.mubr.bf16.mxu0 0
        %560 = vmatmul.mubr.bf16.gmra.mrb[0].mxu0 %v518
        %v561 = vpop.f32.mrb[0].mxu0
        %v562 = vadd.f32 %v504, %v561
        %v563 = vpop.f32.mrb[0].mxu0
        %v564 = vpop.f32.mrb[0].mxu0
        %v565 = vadd.f32 %v504, %v564
        %v566 = vpop.f32.mrb[0].mxu0
        %567 = vmatprep.mubr.bf16.mxu0 0
        %568 = vmatmul.mubr.bf16.gmra.mrb[0].mxu0 %v521
        %v569 = vpop.f32.mrb[0].mxu0
        %v570 = vadd.f32 %v504, %v569
        %v571 = vpop.f32.mrb[0].mxu0
        %v572 = vpop.f32.mrb[0].mxu0
        %v573 = vadd.f32 %v504, %v572
        %v574 = vpop.f32.mrb[0].mxu0
        %575 = vdwg.mxu0
        %v576 = vpack.c.bf16 %v565, %v562
        %v577 = vpack.c.bf16 %v573, %v570
        %v579 = vlaneseq
        %v580 = vshrl.u32 %v579, 7
        %v581 = vsub.s32 0, %v580
        %v582 = vrot.slane %v478, %v581
        %v600 = vunpack.c.l.b16 %v462
        %v601 = vunpack.c.l.b16 %v463
        %v602 = vunpack.c.l.b16 %v464
        %v603 = vunpack.c.l.b16 %v465
        %v604 = vunpack.c.l.b16 %v466
        %v605 = vunpack.c.l.b16 %v467
        %v606 = vunpack.c.l.b16 %v468
        %v607 = vunpack.c.l.b16 %v469
        %v608 = vunpack.c.l.b16 %v470
        %v609 = vunpack.c.l.b16 %v471
        %v610 = vunpack.c.l.b16 %v472
        %v611 = vunpack.c.l.b16 %v473
        %v612 = vunpack.c.l.b16 %v474
        %v613 = vunpack.c.l.b16 %v475
        %v614 = vunpack.c.l.b16 %v476
        %v615 = vunpack.c.l.b16 %v477
        %v616 = vpack.c.b16 %v601, %v600
        %v617 = vpack.c.b16 %v603, %v602
        %v618 = vpack.c.b16 %v605, %v604
        %v619 = vpack.c.b16 %v607, %v606
        %v620 = vpack.c.b16 %v609, %v608
        %v621 = vpack.c.b16 %v611, %v610
        %v622 = vpack.c.b16 %v613, %v612
        %v623 = vpack.c.b16 %v615, %v614
        %632 = vmatprep.subr.bf16.mxu0 0
        %633 = vmatpush1.bf16.msra.mxu0 %v616
        %634 = vmatprep.subr.bf16.mxu0 0
        %635 = vmatpush1.bf16.msra.mxu0 %v617
        %636 = vmatprep.subr.bf16.mxu0 0
        %637 = vmatpush1.bf16.msra.mxu0 %v618
        %638 = vmatprep.subr.bf16.mxu0 0
        %639 = vmatpush1.bf16.msra.mxu0 %v619
        %640 = vmatprep.subr.bf16.mxu0 0
        %641 = vmatpush1.bf16.msra.mxu0 %v620
        %642 = vmatprep.subr.bf16.mxu0 0
        %643 = vmatpush1.bf16.msra.mxu0 %v621
        %644 = vmatprep.subr.bf16.mxu0 0
        %645 = vmatpush1.bf16.msra.mxu0 %v622
        %646 = vmatprep.subr.bf16.mxu0 0
        %647 = vmatpush1.bf16.msra.mxu0 %v623
        %648 = vmatprep.subr.bf16.mxu0 0
        %649 = vmatpush1.bf16.msra.mxu0 0
        %650 = vmatprep.subr.bf16.mxu0 0
        %651 = vmatpush1.bf16.msra.mxu0 0
        %652 = vmatprep.subr.bf16.mxu0 0
        %653 = vmatpush1.bf16.msra.mxu0 0
        %654 = vmatprep.subr.bf16.mxu0 0
        %655 = vmatpush1.bf16.msra.mxu0 0
        %656 = vmatprep.subr.bf16.mxu0 0
        %657 = vmatpush1.bf16.msra.mxu0 0
        %658 = vmatprep.subr.bf16.mxu0 0
        %659 = vmatpush1.bf16.msra.mxu0 0
        %660 = vmatprep.subr.bf16.mxu0 0
        %661 = vmatpush1.bf16.msra.mxu0 0
        %662 = vmatprep.subr.bf16.mxu0 0
        %663 = vmatpush1.bf16.msra.mxu0 0
        %664 = vmatprep.mubr.bf16.mxu0 0
        %665 = vmatmul.mubr.bf16.gmra.mrb[0].mxu0 %v576
        %v666 = vpop.f32.mrb[0].mxu0
        %v667 = vadd.f32 %v582, %v666
        %v668 = vpop.f32.mrb[0].mxu0
        %v669 = vpop.f32.mrb[0].mxu0
        %v670 = vadd.f32 %v582, %v669
        %v671 = vpop.f32.mrb[0].mxu0
        %672 = vmatprep.mubr.bf16.mxu0 0
        %673 = vmatmul.mubr.bf16.gmra.mrb[0].mxu0 %v577
        %v674 = vpop.f32.mrb[0].mxu0
        %v675 = vadd.f32 %v582, %v674
        %v676 = vpop.f32.mrb[0].mxu0
        %v677 = vpop.f32.mrb[0].mxu0
        %v678 = vadd.f32 %v582, %v677
        %v679 = vpop.f32.mrb[0].mxu0
        %680 = vdwg.mxu0
        %v681 = vtanh.pop %v667
        %v682 = vtanh.pop %v670
        %v683 = vtanh.pop %v675
        %v684 = vtanh.pop %v678
        %v685 = vpack.c.bf16 %v682, %v681
        %v686 = vpack.c.bf16 %v684, %v683
        %v688 = vlaneseq
        %v689 = vshrl.u32 %v688, 7
        %v690 = vsub.s32 0, %v689
        %v691 = vrot.slane %v461, %v690
        %v709 = vunpack.c.l.b16 %v445
        %v710 = vunpack.c.l.b16 %v446
        %v711 = vunpack.c.l.b16 %v447
        %v712 = vunpack.c.l.b16 %v448
        %v713 = vunpack.c.l.b16 %v449
        %v714 = vunpack.c.l.b16 %v450
        %v715 = vunpack.c.l.b16 %v451
        %v716 = vunpack.c.l.b16 %v452
        %v717 = vunpack.c.l.b16 %v453
        %v718 = vunpack.c.l.b16 %v454
        %v719 = vunpack.c.l.b16 %v455
        %v720 = vunpack.c.l.b16 %v456
        %v721 = vunpack.c.l.b16 %v457
        %v722 = vunpack.c.l.b16 %v458
        %v723 = vunpack.c.l.b16 %v459
        %v724 = vunpack.c.l.b16 %v460
        %v725 = vpack.c.b16 %v710, %v709
        %v726 = vpack.c.b16 %v712, %v711
        %v727 = vpack.c.b16 %v714, %v713
        %v728 = vpack.c.b16 %v716, %v715
        %v729 = vpack.c.b16 %v718, %v717
        %v730 = vpack.c.b16 %v720, %v719
        %v731 = vpack.c.b16 %v722, %v721
        %v732 = vpack.c.b16 %v724, %v723
        %741 = vmatprep.subr.bf16.mxu0 0
        %742 = vmatpush1.bf16.msra.mxu0 %v725
        %743 = vmatprep.subr.bf16.mxu0 0
        %744 = vmatpush1.bf16.msra.mxu0 %v726
        %745 = vmatprep.subr.bf16.mxu0 0
        %746 = vmatpush1.bf16.msra.mxu0 %v727
        %747 = vmatprep.subr.bf16.mxu0 0
        %748 = vmatpush1.bf16.msra.mxu0 %v728
        %749 = vmatprep.subr.bf16.mxu0 0
        %750 = vmatpush1.bf16.msra.mxu0 %v729
        %751 = vmatprep.subr.bf16.mxu0 0
        %752 = vmatpush1.bf16.msra.mxu0 %v730
        %753 = vmatprep.subr.bf16.mxu0 0
        %754 = vmatpush1.bf16.msra.mxu0 %v731
        %755 = vmatprep.subr.bf16.mxu0 0
        %756 = vmatpush1.bf16.msra.mxu0 %v732
        %757 = vmatprep.subr.bf16.mxu0 0
        %758 = vmatpush1.bf16.msra.mxu0 0
        %759 = vmatprep.subr.bf16.mxu0 0
        %760 = vmatpush1.bf16.msra.mxu0 0
        %761 = vmatprep.subr.bf16.mxu0 0
        %762 = vmatpush1.bf16.msra.mxu0 0
        %763 = vmatprep.subr.bf16.mxu0 0
        %764 = vmatpush1.bf16.msra.mxu0 0
        %765 = vmatprep.subr.bf16.mxu0 0
        %766 = vmatpush1.bf16.msra.mxu0 0
        %767 = vmatprep.subr.bf16.mxu0 0
        %768 = vmatpush1.bf16.msra.mxu0 0
        %769 = vmatprep.subr.bf16.mxu0 0
        %770 = vmatpush1.bf16.msra.mxu0 0
        %771 = vmatprep.subr.bf16.mxu0 0
        %772 = vmatpush1.bf16.msra.mxu0 0
        %773 = vmatprep.mubr.bf16.mxu0 0
        %774 = vmatmul.mubr.bf16.gmra.mrb[0].mxu0 %v685
        %v775 = vpop.f32.mrb[0].mxu0
        %v776 = vadd.f32 %v691, %v775
        %v777 = vpop.f32.mrb[0].mxu0
        %v778 = vpop.f32.mrb[0].mxu0
        %v779 = vadd.f32 %v691, %v778
        %v780 = vpop.f32.mrb[0].mxu0
        %781 = vmatprep.mubr.bf16.mxu0 0
        %782 = vmatmul.mubr.bf16.gmra.mrb[0].mxu0 %v686
        %v783 = vpop.f32.mrb[0].mxu0
        %v784 = vadd.f32 %v691, %v783
        %v785 = vpop.f32.mrb[0].mxu0
        %v786 = vpop.f32.mrb[0].mxu0
        %v787 = vadd.f32 %v691, %v786
        %v788 = vpop.f32.mrb[0].mxu0
        %789 = vdwg.mxu0
        %v790 = vtanh.pop %v776
        %v791 = vtanh.pop %v779
        %v792 = vtanh.pop %v784
        %v793 = vtanh.pop %v787
        %v794 = vadd.f32 %v790, %v562
        %v795 = vadd.f32 %v791, %v565
        %v796 = vadd.f32 %v792, %v570
        %v797 = vadd.f32 %v793, %v573
        %v798 = vpack.c.bf16 %v795, %v794
        %v799 = vpack.c.bf16 %v797, %v796
        %800 = vmatprep.subr.bf16.mxu0 0
        %801 = vmatpush1.bf16.msra.mxu0 %v616
        %802 = vmatprep.subr.bf16.mxu0 0
        %803 = vmatpush1.bf16.msra.mxu0 %v617
        %804 = vmatprep.subr.bf16.mxu0 0
        %805 = vmatpush1.bf16.msra.mxu0 %v618
        %806 = vmatprep.subr.bf16.mxu0 0
        %807 = vmatpush1.bf16.msra.mxu0 %v619
        %808 = vmatprep.subr.bf16.mxu0 0
        %809 = vmatpush1.bf16.msra.mxu0 %v620
        %810 = vmatprep.subr.bf16.mxu0 0
        %811 = vmatpush1.bf16.msra.mxu0 %v621
        %812 = vmatprep.subr.bf16.mxu0 0
        %813 = vmatpush1.bf16.msra.mxu0 %v622
        %814 = vmatprep.subr.bf16.mxu0 0
        %815 = vmatpush1.bf16.msra.mxu0 %v623
        %816 = vmatprep.subr.bf16.mxu0 0
        %817 = vmatpush1.bf16.msra.mxu0 0
        %818 = vmatprep.subr.bf16.mxu0 0
        %819 = vmatpush1.bf16.msra.mxu0 0
        %820 = vmatprep.subr.bf16.mxu0 0
        %821 = vmatpush1.bf16.msra.mxu0 0
        %822 = vmatprep.subr.bf16.mxu0 0
        %823 = vmatpush1.bf16.msra.mxu0 0
        %824 = vmatprep.subr.bf16.mxu0 0
        %825 = vmatpush1.bf16.msra.mxu0 0
        %826 = vmatprep.subr.bf16.mxu0 0
        %827 = vmatpush1.bf16.msra.mxu0 0
        %828 = vmatprep.subr.bf16.mxu0 0
        %829 = vmatpush1.bf16.msra.mxu0 0
        %830 = vmatprep.subr.bf16.mxu0 0
        %831 = vmatpush1.bf16.msra.mxu0 0
        %832 = vmatprep.mubr.bf16.mxu0 0
        %833 = vmatmul.mubr.bf16.gmra.mrb[0].mxu0 %v798
        %v834 = vpop.f32.mrb[0].mxu0
        %v835 = vadd.f32 %v582, %v834
        %v836 = vpop.f32.mrb[0].mxu0
        %v837 = vpop.f32.mrb[0].mxu0
        %v838 = vadd.f32 %v582, %v837
        %v839 = vpop.f32.mrb[0].mxu0
        %840 = vmatprep.mubr.bf16.mxu0 0
        %841 = vmatmul.mubr.bf16.gmra.mrb[0].mxu0 %v799
        %v842 = vpop.f32.mrb[0].mxu0
        %v843 = vadd.f32 %v582, %v842
        %v844 = vpop.f32.mrb[0].mxu0
        %v845 = vpop.f32.mrb[0].mxu0
        %v846 = vadd.f32 %v582, %v845
        %v847 = vpop.f32.mrb[0].mxu0
        %848 = vdwg.mxu0
        %v849 = vtanh.pop %v835
        %v850 = vtanh.pop %v838
        %v851 = vtanh.pop %v843
        %v852 = vtanh.pop %v846
        %v853 = vpack.c.bf16 %v850, %v849
        %v854 = vpack.c.bf16 %v852, %v851
        %855 = vmatprep.subr.bf16.mxu0 0
        %856 = vmatpush1.bf16.msra.mxu0 %v725
        %857 = vmatprep.subr.bf16.mxu0 0
        %858 = vmatpush1.bf16.msra.mxu0 %v726
        %859 = vmatprep.subr.bf16.mxu0 0
        %860 = vmatpush1.bf16.msra.mxu0 %v727
        %861 = vmatprep.subr.bf16.mxu0 0
        %862 = vmatpush1.bf16.msra.mxu0 %v728
        %863 = vmatprep.subr.bf16.mxu0 0
        %864 = vmatpush1.bf16.msra.mxu0 %v729
        %865 = vmatprep.subr.bf16.mxu0 0
        %866 = vmatpush1.bf16.msra.mxu0 %v730
        %867 = vmatprep.subr.bf16.mxu0 0
        %868 = vmatpush1.bf16.msra.mxu0 %v731
        %869 = vmatprep.subr.bf16.mxu0 0
        %870 = vmatpush1.bf16.msra.mxu0 %v732
        %871 = vmatprep.subr.bf16.mxu0 0
        %872 = vmatpush1.bf16.msra.mxu0 0
        %873 = vmatprep.subr.bf16.mxu0 0
        %874 = vmatpush1.bf16.msra.mxu0 0
        %875 = vmatprep.subr.bf16.mxu0 0
        %876 = vmatpush1.bf16.msra.mxu0 0
        %877 = vmatprep.subr.bf16.mxu0 0
        %878 = vmatpush1.bf16.msra.mxu0 0
        %879 = vmatprep.subr.bf16.mxu0 0
        %880 = vmatpush1.bf16.msra.mxu0 0
        %881 = vmatprep.subr.bf16.mxu0 0
        %882 = vmatpush1.bf16.msra.mxu0 0
        %883 = vmatprep.subr.bf16.mxu0 0
        %884 = vmatpush1.bf16.msra.mxu0 0
        %885 = vmatprep.subr.bf16.mxu0 0
        %886 = vmatpush1.bf16.msra.mxu0 0
        %887 = vmatprep.mubr.bf16.mxu0 0
        %888 = vmatmul.mubr.bf16.gmra.mrb[0].mxu0 %v853
        %v889 = vpop.f32.mrb[0].mxu0
        %v890 = vadd.f32 %v691, %v889
        %v891 = vpop.f32.mrb[0].mxu0
        %v892 = vpop.f32.mrb[0].mxu0
        %v893 = vadd.f32 %v691, %v892
        %v894 = vpop.f32.mrb[0].mxu0
        %895 = vmatprep.mubr.bf16.mxu0 0
        %896 = vmatmul.mubr.bf16.gmra.mrb[0].mxu0 %v854
        %v897 = vpop.f32.mrb[0].mxu0
        %v898 = vadd.f32 %v691, %v897
        %v899 = vpop.f32.mrb[0].mxu0
        %v900 = vpop.f32.mrb[0].mxu0
        %v901 = vadd.f32 %v691, %v900
        %v902 = vpop.f32.mrb[0].mxu0
        %903 = vdwg.mxu0
        %v904 = vtanh.pop %v890
        %v905 = vtanh.pop %v893
        %v906 = vtanh.pop %v898
        %v907 = vtanh.pop %v901
        %v908 = vadd.f32 %v904, %v794
        %v909 = vadd.f32 %v905, %v795
        %v910 = vadd.f32 %v906, %v796
        %v911 = vadd.f32 %v907, %v797
        %v912 = vpack.c.bf16 %v909, %v908
        %v913 = vpack.c.bf16 %v911, %v910
        %914 = vmatprep.subr.bf16.mxu0 0
        %915 = vmatpush1.bf16.msra.mxu0 %v616
        %916 = vmatprep.subr.bf16.mxu0 0
        %917 = vmatpush1.bf16.msra.mxu0 %v617
        %918 = vmatprep.subr.bf16.mxu0 0
        %919 = vmatpush1.bf16.msra.mxu0 %v618
        %920 = vmatprep.subr.bf16.mxu0 0
        %921 = vmatpush1.bf16.msra.mxu0 %v619
        %922 = vmatprep.subr.bf16.mxu0 0
        %923 = vmatpush1.bf16.msra.mxu0 %v620
        %924 = vmatprep.subr.bf16.mxu0 0
        %925 = vmatpush1.bf16.msra.mxu0 %v621
        %926 = vmatprep.subr.bf16.mxu0 0
        %927 = vmatpush1.bf16.msra.mxu0 %v622
        %928 = vmatprep.subr.bf16.mxu0 0
        %929 = vmatpush1.bf16.msra.mxu0 %v623
        %930 = vmatprep.subr.bf16.mxu0 0
        %931 = vmatpush1.bf16.msra.mxu0 0
        %932 = vmatprep.subr.bf16.mxu0 0
        %933 = vmatpush1.bf16.msra.mxu0 0
        %934 = vmatprep.subr.bf16.mxu0 0
        %935 = vmatpush1.bf16.msra.mxu0 0
        %936 = vmatprep.subr.bf16.mxu0 0
        %937 = vmatpush1.bf16.msra.mxu0 0
        %938 = vmatprep.subr.bf16.mxu0 0
        %939 = vmatpush1.bf16.msra.mxu0 0
        %940 = vmatprep.subr.bf16.mxu0 0
        %941 = vmatpush1.bf16.msra.mxu0 0
        %942 = vmatprep.subr.bf16.mxu0 0
        %943 = vmatpush1.bf16.msra.mxu0 0
        %944 = vmatprep.subr.bf16.mxu0 0
        %945 = vmatpush1.bf16.msra.mxu0 0
        %946 = vmatprep.mubr.bf16.mxu0 0
        %947 = vmatmul.mubr.bf16.gmra.mrb[0].mxu0 %v912
        %v948 = vpop.f32.mrb[0].mxu0
        %v949 = vadd.f32 %v582, %v948
        %v950 = vpop.f32.mrb[0].mxu0
        %v951 = vpop.f32.mrb[0].mxu0
        %v952 = vadd.f32 %v582, %v951
        %v953 = vpop.f32.mrb[0].mxu0
        %954 = vmatprep.mubr.bf16.mxu0 0
        %955 = vmatmul.mubr.bf16.gmra.mrb[0].mxu0 %v913
        %v956 = vpop.f32.mrb[0].mxu0
        %v957 = vadd.f32 %v582, %v956
        %v958 = vpop.f32.mrb[0].mxu0
        %v959 = vpop.f32.mrb[0].mxu0
        %v960 = vadd.f32 %v582, %v959
        %v961 = vpop.f32.mrb[0].mxu0
        %962 = vdwg.mxu0
        %v963 = vtanh.pop %v949
        %v964 = vtanh.pop %v952
        %v965 = vtanh.pop %v957
        %v966 = vtanh.pop %v960
        %v967 = vpack.c.bf16 %v964, %v963
        %v968 = vpack.c.bf16 %v966, %v965
        %969 = vmatprep.subr.bf16.mxu0 0
        %970 = vmatpush1.bf16.msra.mxu0 %v725
        %971 = vmatprep.subr.bf16.mxu0 0
        %972 = vmatpush1.bf16.msra.mxu0 %v726
        %973 = vmatprep.subr.bf16.mxu0 0
        %974 = vmatpush1.bf16.msra.mxu0 %v727
        %975 = vmatprep.subr.bf16.mxu0 0
        %976 = vmatpush1.bf16.msra.mxu0 %v728
        %977 = vmatprep.subr.bf16.mxu0 0
        %978 = vmatpush1.bf16.msra.mxu0 %v729
        %979 = vmatprep.subr.bf16.mxu0 0
        %980 = vmatpush1.bf16.msra.mxu0 %v730
        %981 = vmatprep.subr.bf16.mxu0 0
        %982 = vmatpush1.bf16.msra.mxu0 %v731
        %983 = vmatprep.subr.bf16.mxu0 0
        %984 = vmatpush1.bf16.msra.mxu0 %v732
        %985 = vmatprep.subr.bf16.mxu0 0
        %986 = vmatpush1.bf16.msra.mxu0 0
        %987 = vmatprep.subr.bf16.mxu0 0
        %988 = vmatpush1.bf16.msra.mxu0 0
        %989 = vmatprep.subr.bf16.mxu0 0
        %990 = vmatpush1.bf16.msra.mxu0 0
        %991 = vmatprep.subr.bf16.mxu0 0
        %992 = vmatpush1.bf16.msra.mxu0 0
        %993 = vmatprep.subr.bf16.mxu0 0
        %994 = vmatpush1.bf16.msra.mxu0 0
        %995 = vmatprep.subr.bf16.mxu0 0
        %996 = vmatpush1.bf16.msra.mxu0 0
        %997 = vmatprep.subr.bf16.mxu0 0
        %998 = vmatpush1.bf16.msra.mxu0 0
        %999 = vmatprep.subr.bf16.mxu0 0
        %1000 = vmatpush1.bf16.msra.mxu0 0
        %1001 = vmatprep.mubr.bf16.mxu0 0
        %1002 = vmatmul.mubr.bf16.gmra.mrb[0].mxu0 %v967
        %v1003 = vpop.f32.mrb[0].mxu0
        %v1004 = vadd.f32 %v691, %v1003
        %v1005 = vpop.f32.mrb[0].mxu0
        %v1006 = vpop.f32.mrb[0].mxu0
        %v1007 = vadd.f32 %v691, %v1006
        %v1008 = vpop.f32.mrb[0].mxu0
        %1009 = vmatprep.mubr.bf16.mxu0 0
        %1010 = vmatmul.mubr.bf16.gmra.mrb[0].mxu0 %v968
        %v1011 = vpop.f32.mrb[0].mxu0
        %v1012 = vadd.f32 %v691, %v1011
        %v1013 = vpop.f32.mrb[0].mxu0
        %v1014 = vpop.f32.mrb[0].mxu0
        %v1015 = vadd.f32 %v691, %v1014
        %v1016 = vpop.f32.mrb[0].mxu0
        %1017 = vdwg.mxu0
        %v1018 = vtanh.pop %v1004
        %v1019 = vtanh.pop %v1007
        %v1020 = vtanh.pop %v1012
        %v1021 = vtanh.pop %v1015
        %v1022 = vadd.f32 %v1018, %v908
        %v1023 = vadd.f32 %v1019, %v909
        %v1024 = vadd.f32 %v1020, %v910
        %v1025 = vadd.f32 %v1021, %v911
        %v1026 = vpack.c.bf16 %v1023, %v1022
        %v1027 = vpack.c.bf16 %v1025, %v1024
        %v1029 = vlaneseq
        %v1030 = vshrl.u32 %v1029, 7
        %v1031 = vsub.s32 0, %v1030
        %v1032 = vrot.slane %v495, %v1031
        %v1050 = vunpack.c.l.b16 %v479
        %v1051 = vunpack.c.l.b16 %v480
        %v1052 = vunpack.c.l.b16 %v481
        %v1053 = vunpack.c.l.b16 %v482
        %v1054 = vunpack.c.l.b16 %v483
        %v1055 = vunpack.c.l.b16 %v484
        %v1056 = vunpack.c.l.b16 %v485
        %v1057 = vunpack.c.l.b16 %v486
        %v1058 = vunpack.c.l.b16 %v487
        %v1059 = vunpack.c.l.b16 %v488
        %v1060 = vunpack.c.l.b16 %v489
        %v1061 = vunpack.c.l.b16 %v490
        %v1062 = vunpack.c.l.b16 %v491
        %v1063 = vunpack.c.l.b16 %v492
        %v1064 = vunpack.c.l.b16 %v493
        %v1065 = vunpack.c.l.b16 %v494
        %v1066 = vpack.c.b16 %v1051, %v1050
        %v1067 = vpack.c.b16 %v1053, %v1052
        %v1068 = vpack.c.b16 %v1055, %v1054
        %v1069 = vpack.c.b16 %v1057, %v1056
        %v1070 = vpack.c.b16 %v1059, %v1058
        %v1071 = vpack.c.b16 %v1061, %v1060
        %v1072 = vpack.c.b16 %v1063, %v1062
        %v1073 = vpack.c.b16 %v1065, %v1064
        %1082 = vmatprep.subr.bf16.mxu0 0
        %1083 = vmatpush1.bf16.msra.mxu0 %v1066
        %1084 = vmatprep.subr.bf16.mxu0 0
        %1085 = vmatpush1.bf16.msra.mxu0 %v1067
        %1086 = vmatprep.subr.bf16.mxu0 0
        %1087 = vmatpush1.bf16.msra.mxu0 %v1068
        %1088 = vmatprep.subr.bf16.mxu0 0
        %1089 = vmatpush1.bf16.msra.mxu0 %v1069
        %1090 = vmatprep.subr.bf16.mxu0 0
        %1091 = vmatpush1.bf16.msra.mxu0 %v1070
        %1092 = vmatprep.subr.bf16.mxu0 0
        %1093 = vmatpush1.bf16.msra.mxu0 %v1071
        %1094 = vmatprep.subr.bf16.mxu0 0
        %1095 = vmatpush1.bf16.msra.mxu0 %v1072
        %1096 = vmatprep.subr.bf16.mxu0 0
        %1097 = vmatpush1.bf16.msra.mxu0 %v1073
        %1098 = vmatprep.subr.bf16.mxu0 0
        %1099 = vmatpush1.bf16.msra.mxu0 0
        %1100 = vmatprep.subr.bf16.mxu0 0
        %1101 = vmatpush1.bf16.msra.mxu0 0
        %1102 = vmatprep.subr.bf16.mxu0 0
        %1103 = vmatpush1.bf16.msra.mxu0 0
        %1104 = vmatprep.subr.bf16.mxu0 0
        %1105 = vmatpush1.bf16.msra.mxu0 0
        %1106 = vmatprep.subr.bf16.mxu0 0
        %1107 = vmatpush1.bf16.msra.mxu0 0
        %1108 = vmatprep.subr.bf16.mxu0 0
        %1109 = vmatpush1.bf16.msra.mxu0 0
        %1110 = vmatprep.subr.bf16.mxu0 0
        %1111 = vmatpush1.bf16.msra.mxu0 0
        %1112 = vmatprep.subr.bf16.mxu0 0
        %1113 = vmatpush1.bf16.msra.mxu0 0
        %1114 = vmatprep.mubr.bf16.mxu0 0
        %1115 = vmatmul.mubr.bf16.gmra.mrb[0].mxu0 %v1026
        %v1116 = vpop.f32.mrb[0].mxu0
        %v1117 = vadd.f32 %v1032, %v1116
        %v1118 = vpop.f32.mrb[0].mxu0
        %v1119 = vpop.f32.mrb[0].mxu0
        %v1120 = vadd.f32 %v1032, %v1119
        %v1121 = vpop.f32.mrb[0].mxu0
        %1122 = vmatprep.mubr.bf16.mxu0 0
        %1123 = vmatmul.mubr.bf16.gmra.mrb[0].mxu0 %v1027
        %v1124 = vpop.f32.mrb[0].mxu0
        %v1125 = vadd.f32 %v1032, %v1124
        %v1126 = vpop.f32.mrb[0].mxu0
        %v1127 = vpop.f32.mrb[0].mxu0
        %v1128 = vadd.f32 %v1032, %v1127
        %v1129 = vpop.f32.mrb[0].mxu0
        %1130 = vdwg.mxu0
        %v1131 = vtanh.pop %v1117
        %v1132 = vtanh.pop %v1120
        %v1133 = vtanh.pop %v1125
        %v1134 = vtanh.pop %v1128
        %s1135 = sld [smem:[#allocation2]]
        %v1136 = vstv %s1135
        %v1137 = vmul.f32 %v1131, %v1136
        %v1138 = vmul.f32 %v1132, %v1136
        %v1139 = vmul.f32 %v1133, %v1136
        %v1140 = vmul.f32 %v1134, %v1136
        %1141 = vst [vmem:[%s434] sm:$0xff] %v1137
        %1142 = vst [vmem:[%s434 + $0x8] sm:$0xff] %v1138
        %1143 = vst [vmem:[%s434 + $0x10] sm:$0xff] %v1139
        %1144 = vst [vmem:[%s434 + $0x18] sm:$0xff] %v1140
        %s1145 = sand.u32 %s252, 1
        %s1146 = scalar_lea.sflag [#allocation5], %s1145
        %s1147 = sand.u32 %s252, 1
        %s1148 = smul.addr %s1147, 32
        %s1149 = scalar_lea.vmem [#allocation14], %s1148
        // Predicated region
        $region85: #{tpu_custom_call.1} parent=59 // pred_check
          %p1150 = pneg %p262
        $region86: #{tpu_custom_call.1} parent=59 // pred_check_branch
          %1152 = sbr.rel (%p1150) target = $region88
        $region87: #{tpu_custom_call.1} parent=59 // pred_region
          %s1153 = smul.u32 4, %s29
          %s1155 = ssub.s32 512, 512
          %1156 = vsyncadd %s1146, %s1155
          %s1157 = smul.addr %s1153, 128
          %s1158 = scalar_lea.hbm %s10, %s1157
          %s1159 = sshll.u32 %s1149, 4
          %s1160 = int_to_ptr.vmem [resolvable:$true] %s1159
          %1165 = dma.vmem_to_hbm [thread:$0]  %s1160, 512, %s1158, %s1146, 128, 128, 8
        $region88: #{tpu_custom_call.1} parent=59 // pred_fallthru
          _
      $region60: #{tpu_custom_call.1} parent=5 // pred_fallthru
        _
      %p1166 = scmp.le.s32.totalorder 2, %s24
      // Predicated region
      $region89: #{tpu_custom_call.1} parent=5 // pred_check
        %p1167 = pneg %p1166
      $region90: #{tpu_custom_call.1} parent=5 // pred_check_branch
        %1169 = sbr.rel (%p1167) target = $region92
      $region91: #{tpu_custom_call.1} parent=5 // pred_region
        %s1170 = ssub.s32 %s24, 2
        // Predicated region
        $region93: #{tpu_custom_call.1} parent=91 // pred_check
          %p1171 = pneg %p268
        $region94: #{tpu_custom_call.1} parent=91 // pred_check_branch
          %1173 = sbr.rel (%p1171) target = $region96
        $region95: #{tpu_custom_call.1} parent=91 // pred_region
          %s1174 = sand.u32 %s253, 1
          %s1175 = scalar_lea.sflag [#allocation5], %s1174
          %s1176 = sand.u32 %s253, 1
          %s1177 = smul.addr %s1176, 32
          %s1178 = scalar_lea.vmem [#allocation14], %s1177
          %1179 = dma.done %s1175, 512
        $region96: #{tpu_custom_call.1} parent=91 // pred_fallthru
          _
      $region92: #{tpu_custom_call.1} parent=5 // pred_fallthru
        _
    $region6: #{tpu_custom_call.1} parent=1 // loop_footer
      %s28 = sadd.s32 1, %s24
    $region7: #{tpu_custom_call.1} parent=1 // loop_footer_branch
      %23 = sbr.rel target = $region3
    $region8: #{tpu_custom_call.1} parent=1 // loop_exit
      _
    %1180 = vsyncpa [#allocation4], 1
    %s1181 = scalar_lea.sflag [#allocation4], 1
    %1182 = vsyncpa %s1181, 1
    %1183 = vsyncpa [#allocation7], 1
    %1184 = vsyncpa [#allocation10], 1
    %1185 = vsyncpa [#allocation13], 1
    %1186 = vsyncpa [#allocation5], 1
    %s1187 = scalar_lea.sflag [#allocation5], 1
    %1188 = vsyncpa %s1187, 1

</llo_original>
